<compile_context>
chip_gen: v7x
topology: tpu7x:2x2x1
jax: 0.10.0
libtpu: 0.0.40
codegen_flags: <defaults>
</compile_context>

<pallas_src>
import math

import jax
import jax.numpy as jnp
from jax.experimental import pallas as pl
from jax.experimental.pallas import tpu as pltpu


# ---------------------------------------------------------------------------
# Kernel
# ---------------------------------------------------------------------------

def _sde_marginal_kernel(t_ref, noise_ref, params_ref, o_ref):
    """out = e*mu + sqrt(max(var_scale + e*e*var_diff, 0)) * noise,
    with e = exp(-theta_q * t).

    params_ref is a single (8, H) f32 block resident in VMEM:
      row 0: -theta_q
      row 1:  mu_q
      row 2:  var_scale
      row 3:  var_q - var_scale   (rows 4..7 are sublane padding)
    """
    p = params_ref[...]                          # (8, H) f32
    neg_theta = p[0:1, :]
    mu        = p[1:2, :]
    var_scale = p[2:3, :]
    var_diff  = p[3:4, :]

    t = t_ref[...].astype(jnp.float32)           # (tb, H)
    noise = noise_ref[...].astype(jnp.float32)   # (tb, H)

    e = jnp.exp(neg_theta * t)                   # one EUP exp per element
    var = jnp.maximum(var_scale + (e * e) * var_diff, 0.0)
    out = e * mu + jnp.sqrt(var) * noise
    o_ref[...] = out.astype(o_ref.dtype)


# ---------------------------------------------------------------------------
# Wrapper helpers
# ---------------------------------------------------------------------------

def _round_up(x, m):
    return (x + m - 1) // m * m


def _min_rows_for(dtype):
    itemsize = jnp.dtype(dtype).itemsize
    return {4: 8, 2: 16, 1: 32}.get(itemsize, 8)


def _device_budgets():
    """(vmem_limit_bytes, target_block_bytes), branched on chip generation.

    3 pipelined (tb, H) streams x 2 buffers = 6 live blocks + one tiny param
    block, so target_block*6 must stay well inside vmem_limit.
    """
    try:
        cap = int(pltpu.get_tpu_info().vmem_capacity_bytes)
    except Exception:
        cap = 128 << 20          # unknown (e.g. interpret mode): assume roomy
    if cap <= (64 << 20):
        # v7x-class: 64 MiB physical VMEM per TC -> ~2 MiB blocks, 24 MiB cap.
        return 24 << 20, 2 << 20
    # v5e/v6e: 128 MiB physical -> ~4 MiB blocks, raise scoped limit to 48 MiB.
    return 48 << 20, 4 << 20


def _plan_batch_tiling(B, H, dtype, target_block_bytes):
    """Pick (tile_b, num_grid_steps) with no wrapper-side padding:
      * tile_b is a multiple of the dtype sublane minimum (8/16/32 rows) or
        equals B (full-dim blocks are always legal), so the (8,128) block
        constraint holds even when B is ragged.
      * grid = cdiv(B, tile_b); a ragged last block is masked by Pallas.
      * keep >= 4 grid steps (>= 2 per TensorCore on v7x megacore) when the
        batch allows it, so input-prefetch/output-writeback overlap survives
        parallel sharding.
    """
    min_rows = _min_rows_for(dtype)
    if B <= min_rows:
        return B, 1
    itemsize = jnp.dtype(dtype).itemsize
    row_bytes = max(1, H * itemsize)
    tb = (target_block_bytes // row_bytes) // min_rows * min_rows
    tb = max(min_rows, min(tb, (B // min_rows) * min_rows))
    while tb > min_rows and pl.cdiv(B, tb) < 4:
        tb = max(min_rows, (tb // 2) // min_rows * min_rows)
    return int(tb), int(pl.cdiv(B, tb))


def _pack_params(mu_q, log_var_q, log_sigma, param_theta_q, r_min, r_max):
    """Per-feature parameter math hoisted out of the kernel (tiny [H] ops, XLA
    fuses them).  Returns a single (8, H) f32 array (4 data rows + 4 padding
    rows so the VMEM tile is a clean 8-sublane block)."""
    max_theta_q = -math.log(r_min)
    min_theta_q = -math.log(r_max)
    theta_q = min_theta_q + jax.nn.sigmoid(param_theta_q.astype(jnp.float32)) * (
        max_theta_q - min_theta_q)
    var_scale = 0.5 * jnp.exp(2.0 * log_sigma.astype(jnp.float32)) / theta_q
    var_diff = jnp.exp(log_var_q.astype(jnp.float32)) - var_scale
    H = theta_q.shape[-1]
    rows = jnp.stack([-theta_q, mu_q.astype(jnp.float32), var_scale, var_diff],
                     axis=0)                                   # (4, H)
    return jnp.concatenate([rows, jnp.zeros((4, H), jnp.float32)], axis=0)


# ---------------------------------------------------------------------------
# Public entry point
# ---------------------------------------------------------------------------

def sde_layer_marginal_sample(t, noise, mu_q, log_var_q, log_sigma, param_theta_q,
                              *, r_min=0.01, r_max=0.2, tile_b=None,
                              donate_noise=True):
    """Pallas implementation of SDE_layer.forward(t, sample=True), 'marginal'
    mode, with the standard-normal noise (torch.randn_like) supplied
    explicitly.

    Note: when donate_noise=True the output aliases the `noise` buffer
    (input_output_aliases); `noise` must not be read after this call.
    Note: if H is not a multiple of 128 the (tb, H) output blocks store with
    lane masks; pad/fold H on the caller side if that dominates.
    """
    B, H = t.shape
    assert noise.shape == (B, H), "noise must match t's shape"
    dtype = t.dtype

    vmem_limit, target_block = _device_budgets()
    tb, grid = _plan_batch_tiling(B, H, dtype, target_block)
    if tile_b is not None:
        # Validate/round the manual override so it can't violate the (8,128)
        # block constraint at lowering time.
        min_rows = _min_rows_for(dtype)
        tb = min(B, max(min_rows, _round_up(int(tile_b), min_rows)))
        if tb != B:
            tb = (tb // min_rows) * min_rows
        grid = int(pl.cdiv(B, tb))

    params = _pack_params(mu_q, log_var_q, log_sigma, param_theta_q, r_min, r_max)

    bh_spec = pl.BlockSpec((tb, H), lambda i: (i, 0))
    p_spec = pl.BlockSpec((8, H), lambda i: (0, 0))   # constant block -> resident

    out = pl.pallas_call(
        _sde_marginal_kernel,
        out_shape=jax.ShapeDtypeStruct((B, H), dtype),
        grid_spec=pltpu.PrefetchScalarGridSpec(
            num_scalar_prefetch=0,
            grid=(grid,),
            in_specs=[bh_spec, bh_spec, p_spec],
            out_specs=bh_spec,
        ),
        compiler_params=pltpu.CompilerParams(
            dimension_semantics=("parallel",),
            vmem_limit_bytes=vmem_limit),
        input_output_aliases=({1: 0} if donate_noise else {}),
    )(t, noise, params)
    return out


# ---------------------------------------------------------------------------
# Pure-JAX reference (mirrors the PyTorch forward)
# ---------------------------------------------------------------------------

def _reference(t, noise, mu_q, log_var_q, log_sigma, param_theta_q,
               r_min=0.01, r_max=0.2):
    max_theta_q = -math.log(r_min)
    min_theta_q = -math.log(r_max)
    theta_q = min_theta_q + jax.nn.sigmoid(param_theta_q) * (max_theta_q - min_theta_q)
    theta_t = -theta_q[None, :] * t
    mean = jnp.exp(theta_t) * mu_q[None, :]
    var_scale = 0.5 * jnp.exp(2.0 * log_sigma) / theta_q
    var = var_scale[None, :] + jnp.exp(2.0 * theta_t) * (
        jnp.exp(log_var_q) - var_scale)[None, :]
    return mean + jnp.sqrt(var) * noise


# ---------------------------------------------------------------------------
# Demo / correctness check
# ---------------------------------------------------------------------------

if __name__ == "__main__":
    B, H = 16, 256          # batch of time-points x feature dim (input_shape=(H,))
    T_MAX = 10.0

    key = jax.random.PRNGKey(0)
    k_t, k_noise, k_theta, k_mu, k_lvq = jax.random.split(key, 5)

    # Deterministic parameter init mirroring the PyTorch __init__.
    log_sigma = jnp.full((H,), -5.0, dtype=jnp.float32)                  # ones * -5
    param_theta_q = 0.1 * jax.random.normal(k_theta, (H,), jnp.float32)  # randn * 0.1
    mu_q = 0.1 * jax.random.normal(k_mu, (H,), jnp.float32)              # randn * 0.1
    log_var_q = 0.1 * jax.random.normal(k_lvq, (H,), jnp.float32)        # randn * 0.1

    # Inputs: times in [0, T_MAX] and standard-normal noise (torch.randn_like).
    t = jax.random.uniform(k_t, (B, H), jnp.float32, minval=0.0, maxval=T_MAX)
    noise = jax.random.normal(k_noise, (B, H), jnp.float32)

    # Reference is computed BEFORE the kernel since the noise buffer is donated.
    ref = _reference(t, noise, mu_q, log_var_q, log_sigma, param_theta_q)

    out = sde_layer_marginal_sample(t, noise, mu_q, log_var_q, log_sigma,
                                    param_theta_q)
    out = jax.block_until_ready(out)
    assert out.shape == (B, H)
    assert bool(jnp.all(jnp.isfinite(out)))
    assert jnp.allclose(out, ref, atol=1e-5, rtol=1e-5), "mismatch vs reference"

    print("KERNEL_OK")
</pallas_src>

<mosaic_0001>
module attributes {stable_mosaic.version = 11 : i64} {
  func.func @_sde_marginal_kernel(%arg0: i32, %arg1: memref<8x256xf32, #tpu.memory_space<vmem>>, %arg2: memref<8x256xf32, #tpu.memory_space<vmem>>, %arg3: memref<8x256xf32, #tpu.memory_space<vmem>>, %arg4: memref<8x256xf32, #tpu.memory_space<vmem>>) attributes {dimension_semantics = [#tpu.dimension_semantics<parallel>], iteration_bounds = array<i64: 2>, scalar_prefetch = 0 : i64, scratch_operands = 0 : i64, tpu.core_type = #tpu.core_type<tc>, window_params = [{transform_indices = @transform_0, window_bounds = array<i64: 8, 256>}, {transform_indices = @transform_1, window_bounds = array<i64: 8, 256>}, {pipeline_mode = #tpu.pipeline_mode<synchronous>, transform_indices = @transform_2, window_bounds = array<i64: 8, 256>}, {transform_indices = @transform_3, window_bounds = array<i64: 8, 256>}]} {
    %c0 = arith.constant 0 : index
    %c0_0 = arith.constant 0 : index
    %0 = vector.load %arg3[%c0, %c0_0] : memref<8x256xf32, #tpu.memory_space<vmem>>, vector<8x256xf32>
    %1 = vector.extract_strided_slice %0 {offsets = [0, 0], sizes = [1, 256], strides = [1, 1]} : vector<8x256xf32> to vector<1x256xf32>
    %2 = vector.extract_strided_slice %0 {offsets = [1, 0], sizes = [1, 256], strides = [1, 1]} : vector<8x256xf32> to vector<1x256xf32>
    %3 = vector.extract_strided_slice %0 {offsets = [2, 0], sizes = [1, 256], strides = [1, 1]} : vector<8x256xf32> to vector<1x256xf32>
    %4 = vector.extract_strided_slice %0 {offsets = [3, 0], sizes = [1, 256], strides = [1, 1]} : vector<8x256xf32> to vector<1x256xf32>
    %c0_1 = arith.constant 0 : index
    %c0_2 = arith.constant 0 : index
    %5 = vector.load %arg1[%c0_1, %c0_2] : memref<8x256xf32, #tpu.memory_space<vmem>>, vector<8x256xf32>
    %c0_3 = arith.constant 0 : index
    %c0_4 = arith.constant 0 : index
    %6 = vector.load %arg2[%c0_3, %c0_4] : memref<8x256xf32, #tpu.memory_space<vmem>>, vector<8x256xf32>
    %7 = vector.broadcast %1 : vector<1x256xf32> to vector<8x256xf32>
    %8 = arith.mulf %7, %5 : vector<8x256xf32>
    %9 = math.exp %8 : vector<8x256xf32>
    %10 = arith.mulf %9, %9 : vector<8x256xf32>
    %11 = vector.broadcast %4 : vector<1x256xf32> to vector<8x256xf32>
    %12 = arith.mulf %10, %11 : vector<8x256xf32>
    %13 = vector.broadcast %3 : vector<1x256xf32> to vector<8x256xf32>
    %14 = arith.addf %13, %12 : vector<8x256xf32>
    %cst = arith.constant 0.000000e+00 : f32
    %15 = vector.broadcast %cst : f32 to vector<8x256xf32>
    %16 = arith.maximumf %14, %15 : vector<8x256xf32>
    %17 = vector.broadcast %2 : vector<1x256xf32> to vector<8x256xf32>
    %18 = arith.mulf %9, %17 : vector<8x256xf32>
    %19 = math.sqrt %16 : vector<8x256xf32>
    %20 = arith.mulf %19, %6 : vector<8x256xf32>
    %21 = arith.addf %18, %20 : vector<8x256xf32>
    %c0_5 = arith.constant 0 : index
    %c0_6 = arith.constant 0 : index
    %22 = vector.load %arg4[%c0_5, %c0_6] : memref<8x256xf32, #tpu.memory_space<vmem>>, vector<8x256xf32>
    tpu.vector_store %arg4[%c0_5, %c0_6], %21 {strides = array<i32>} : memref<8x256xf32, #tpu.memory_space<vmem>>, vector<8x256xf32>,
    return
  }
  func.func @transform_0(%arg0: i32) -> (i32, i32) {
    %c0_i32 = arith.constant 0 : i32
    %c0_i32_0 = arith.constant 0 : i32
    return %arg0, %c0_i32 : i32, i32
  }
  func.func @transform_1(%arg0: i32) -> (i32, i32) {
    %c0_i32 = arith.constant 0 : i32
    %c0_i32_0 = arith.constant 0 : i32
    return %arg0, %c0_i32 : i32, i32
  }
  func.func @transform_2(%arg0: i32) -> (i32, i32) {
    %c0_i32 = arith.constant 0 : i32
    %c0_i32_0 = arith.constant 0 : i32
    %c0_i32_1 = arith.constant 0 : i32
    return %c0_i32, %c0_i32_0 : i32, i32
  }
  func.func @transform_3(%arg0: i32) -> (i32, i32) {
    %c0_i32 = arith.constant 0 : i32
    %c0_i32_0 = arith.constant 0 : i32
    return %arg0, %c0_i32 : i32, i32
  }
}

</mosaic_0001>

<llo_original>
// kernel: tpu_custom_call.1
$region0: #{tpu_custom_call.1}
  #allocation0 [shape = 'u32[]', space=smem, size = 0x4, offset = 0x4, fixed_abs, tag = 'smem constant byte address 0x4 - core index']
  #allocation1 [shape = 'u32[144,128]{1,0:T(1,128)}', space=vmem, size = 0x12000, scoped, tag = 'internal scratch']
  %s0 = inlined_call_operand.vmem [shape: f32[16,256], index: 0, kind: input, shape index: {}]
  %s1 = inlined_call_operand.hbm [shape: f32[16,256], index: 1, kind: input, shape index: {}, may-alias: {1,3}]
  %s2 = inlined_call_operand.vmem [shape: f32[8,256], index: 2, kind: input, shape index: {}]
  %s3 = inlined_call_operand.hbm [shape: f32[16,256], index: 3, kind: output, shape index: {}, may-alias: {1,3}]
  %s4 = sld [smem:[#allocation0]]
  $region49: #{tpu_custom_call.1} parent=0
    _
  %s6 = ssub.s32 1, %s4
  %s7 = scalar_select 0, %s6, %s4
  $region1: #{tpu_custom_call.1} parent=0
    #allocation2 [shape = 'u8[16384]{0}', space=vmem, size = 0x4000, scoped, tag = 'input window, operand 1']
    #allocation3 [shape = 's32[2]{0}', space=sflag, size = 0x8, scoped, tag = 'scoped memory for tpu_custom_call.1']
    #allocation4 [shape = 's32[2]{0}', space=sflag, size = 0x8, scoped, tag = 'scoped memory for tpu_custom_call.1']
    #allocation5 [shape = 'u8[16384]{0}', space=vmem, size = 0x4000, scoped, tag = 'output window, operand 0']
    %8 = vsyncpa [#allocation3], 0
    %s9 = scalar_lea.sflag [#allocation3], 1
    %10 = vsyncpa %s9, 0
    %11 = vsyncpa [#allocation4], 0
    %s12 = scalar_lea.sflag [#allocation4], 1
    %13 = vsyncpa %s12, 0
    loop: start=0, step=1, limit=4
    $region2: #{tpu_custom_call.1} parent=1 // loop_pre_header
      _
    $region3: #{tpu_custom_call.1} parent=1 // loop_header
      %s15 = sphi 0, %s19
      %p16 = scmp.ge.s32.totalorder %s15, 4
      %s25 = sphi 0, %s27
      %s28 = sphi 0, %s25
      %s29 = sphi 0, %s28
      %s45 = sphi 0, %s29
      %s51 = sphi 0, %s53
      %s54 = sphi 0, %s51
      %s55 = sphi 0, %s54
      %s71 = sphi 0, %s55
      %s75 = sphi 0, %s75
      %s77 = sphi 0, %s75
      %s78 = sphi 0, %s77
      %s92 = sphi 0, %s78
      %s98 = sphi 0, %s100
      %s101 = sphi 0, %s98
      %s102 = sphi 0, %s101
      %s118 = sphi 0, %s102
    $region4: #{tpu_custom_call.1} parent=1 // loop_header_branch
      %18 = sbr.rel (%p16) target = $region8
    $region5: #{tpu_custom_call.1} parent=1 // loop_body
      %s20 = ssub.s32 %s15, 1
      %s21 = ssub.s32 %s15, 2
      %s22 = sadd.s32 %s15, 1
      %s23 = ssub.s32 %s15, %s22
      %p24 = scmp.eq.s32.totalorder %s23, 0
      %s26 = sadd.s32 %s25, 1
      %s27 = scalar_select %p24, %s25, %s26
      %p30 = pneg %p24
      %p31 = scmp.eq.s32.totalorder %s15, 1
      %p32 = por %p30, %p31
      %p33 = scmp.ne.s32.totalorder %s25, %s28
      %p34 = scmp.eq.s32.totalorder %s15, 0
      %p35 = por %p33, %p34
      %p36 = scmp.ne.s32.totalorder %s25, %s28
      %p37 = scmp.eq.s32.totalorder %s20, 1
      %p38 = por %p36, %p37
      %p39 = scmp.ne.s32.totalorder %s28, %s29
      %p40 = scmp.eq.s32.totalorder %s20, 0
      %p41 = por %p39, %p40
      %p42 = scmp.ne.s32.totalorder %s28, %s29
      %p43 = scmp.eq.s32.totalorder %s21, 1
      %p44 = por %p42, %p43
      %p46 = scmp.ne.s32.totalorder %s29, %s45
      %p47 = scmp.eq.s32.totalorder %s21, 0
      %p48 = por %p46, %p47
      %s49 = ssub.s32 %s15, %s22
      %p50 = scmp.eq.s32.totalorder %s49, 0
      %s52 = sadd.s32 %s51, 1
      %s53 = scalar_select %p50, %s51, %s52
      %p56 = pneg %p50
      %p57 = scmp.eq.s32.totalorder %s15, 1
      %p58 = por %p56, %p57
      %p59 = scmp.ne.s32.totalorder %s51, %s54
      %p60 = scmp.eq.s32.totalorder %s15, 0
      %p61 = por %p59, %p60
      %p62 = scmp.ne.s32.totalorder %s51, %s54
      %p63 = scmp.eq.s32.totalorder %s20, 1
      %p64 = por %p62, %p63
      %p65 = scmp.ne.s32.totalorder %s54, %s55
      %p66 = scmp.eq.s32.totalorder %s20, 0
      %p67 = por %p65, %p66
      %p68 = scmp.ne.s32.totalorder %s54, %s55
      %p69 = scmp.eq.s32.totalorder %s21, 1
      %p70 = por %p68, %p69
      %p72 = scmp.ne.s32.totalorder %s55, %s71
      %p73 = scmp.eq.s32.totalorder %s21, 0
      %p74 = por %p72, %p73
      %s76 = sadd.s32 %s75, 1
      %p79 = scmp.eq.s32.totalorder %s15, 1
      %p80 = scmp.ne.s32.totalorder %s75, %s77
      %p81 = scmp.eq.s32.totalorder %s15, 0
      %p82 = por %p80, %p81
      %p83 = scmp.ne.s32.totalorder %s75, %s77
      %p84 = scmp.eq.s32.totalorder %s20, 1
      %p85 = por %p83, %p84
      %p86 = scmp.ne.s32.totalorder %s77, %s78
      %p87 = scmp.eq.s32.totalorder %s20, 0
      %p88 = por %p86, %p87
      %p89 = scmp.ne.s32.totalorder %s77, %s78
      %p90 = scmp.eq.s32.totalorder %s21, 1
      %p91 = por %p89, %p90
      %p93 = scmp.ne.s32.totalorder %s78, %s92
      %p94 = scmp.eq.s32.totalorder %s21, 0
      %p95 = por %p93, %p94
      %s96 = ssub.s32 %s15, %s22
      %p97 = scmp.eq.s32.totalorder %s96, 0
      %s99 = sadd.s32 %s98, 1
      %s100 = scalar_select %p97, %s98, %s99
      %p103 = pneg %p97
      %p104 = scmp.eq.s32.totalorder %s15, 1
      %p105 = por %p103, %p104
      %p106 = scmp.ne.s32.totalorder %s98, %s101
      %p107 = scmp.eq.s32.totalorder %s15, 0
      %p108 = por %p106, %p107
      %p109 = scmp.ne.s32.totalorder %s98, %s101
      %p110 = scmp.eq.s32.totalorder %s20, 1
      %p111 = por %p109, %p110
      %p112 = scmp.ne.s32.totalorder %s101, %s102
      %p113 = scmp.eq.s32.totalorder %s20, 0
      %p114 = por %p112, %p113
      %p115 = scmp.ne.s32.totalorder %s101, %s102
      %p116 = scmp.eq.s32.totalorder %s21, 1
      %p117 = por %p115, %p116
      %p119 = scmp.ne.s32.totalorder %s102, %s118
      %p120 = scmp.eq.s32.totalorder %s21, 0
      %p121 = por %p119, %p120
      %p122 = scmp.le.s32.totalorder 1, %s15
      %p123 = scmp.lt.s32.totalorder %s15, 3
      %p124 = pnand %p122, %p123
      %p125 = pneg %p124
      // Predicated region
      $region9: #{tpu_custom_call.1} parent=5 // pred_check
        _
      $region10: #{tpu_custom_call.1} parent=5 // pred_check_branch
        %127 = sbr.rel (%p124) target = $region12
      $region11: #{tpu_custom_call.1} parent=5 // pred_region
        %s128 = ssub.s32 %s15, 1
        // Predicated region
        $region13: #{tpu_custom_call.1} parent=11 // pred_check
          %p129 = pneg %p88
        $region14: #{tpu_custom_call.1} parent=11 // pred_check_branch
          %131 = sbr.rel (%p129) target = $region16
        $region15: #{tpu_custom_call.1} parent=11 // pred_region
          _
        $region16: #{tpu_custom_call.1} parent=11 // pred_fallthru
          _
      $region12: #{tpu_custom_call.1} parent=5 // pred_fallthru
        _
      %p132 = scmp.lt.s32.totalorder %s15, 2
      // Predicated region
      $region17: #{tpu_custom_call.1} parent=5 // pred_check
        %p133 = pneg %p132
      $region18: #{tpu_custom_call.1} parent=5 // pred_check_branch
        %135 = sbr.rel (%p133) target = $region20
      $region19: #{tpu_custom_call.1} parent=5 // pred_region
        // Predicated region
        $region21: #{tpu_custom_call.1} parent=19 // pred_check
          %p136 = pneg %p35
        $region22: #{tpu_custom_call.1} parent=19 // pred_check_branch
          %138 = sbr.rel (%p136) target = $region24
        $region23: #{tpu_custom_call.1} parent=19 // pred_region
          %p139 = scmp.lt.s32.totalorder %s15, 1
          %s140 = scalar_select %p139, %s15, 1
          %s141 = smul.addr %s140, 2
          %s142 = smul.addr %s141, 8
          %s143 = scalar_lea.vmem %s0, %s142
        $region24: #{tpu_custom_call.1} parent=19 // pred_fallthru
          _
        // Predicated region
        $region25: #{tpu_custom_call.1} parent=19 // pred_check
          %p144 = pneg %p61
        $region26: #{tpu_custom_call.1} parent=19 // pred_check_branch
          %146 = sbr.rel (%p144) target = $region28
        $region27: #{tpu_custom_call.1} parent=19 // pred_region
          %s147 = sand.u32 %s51, 1
          %s148 = scalar_lea.sflag [#allocation3], %s147
          %s149 = sand.u32 %s51, 1
          %s150 = smul.addr %s149, 16
          %s151 = scalar_lea.vmem [#allocation2], %s150
          %s153 = ssub.s32 256, 256
          %154 = vsyncadd %s148, %s153
          %s155 = smul.addr %s15, 2
          %s156 = smul.addr %s155, 128
          %s157 = scalar_lea.hbm %s1, %s156
          %s159 = sshll.u32 %s151, 4
          %s160 = int_to_ptr.vmem [resolvable:$true] %s159
          %162 = dma.hbm_to_vmem [thread:$0]  %s157, 256, %s160, %s148
        $region28: #{tpu_custom_call.1} parent=19 // pred_fallthru
          _
      $region20: #{tpu_custom_call.1} parent=5 // pred_fallthru
        _
      %p163 = scmp.le.s32.totalorder 1, %s15
      %p164 = scmp.lt.s32.totalorder %s15, 3
      %p165 = pnand %p163, %p164
      %p166 = pneg %p165
      // Predicated region
      $region29: #{tpu_custom_call.1} parent=5 // pred_check
        _
      $region30: #{tpu_custom_call.1} parent=5 // pred_check_branch
        %168 = sbr.rel (%p165) target = $region32
      $region31: #{tpu_custom_call.1} parent=5 // pred_region
        %s169 = ssub.s32 %s15, 1
        %s170 = sand.u32 %s54, 1
        %s171 = scalar_lea.sflag [#allocation3], %s170
        %s172 = sand.u32 %s54, 1
        %s173 = smul.addr %s172, 16
        %s174 = scalar_lea.vmem [#allocation2], %s173
        // Predicated region
        $region33: #{tpu_custom_call.1} parent=31 // pred_check
          %p175 = pneg %p67
        $region34: #{tpu_custom_call.1} parent=31 // pred_check_branch
          %177 = sbr.rel (%p175) target = $region36
        $region35: #{tpu_custom_call.1} parent=31 // pred_region
          %178 = dma.done %s171, 256
        $region36: #{tpu_custom_call.1} parent=31 // pred_fallthru
          _
        %p179 = scmp.lt.s32.totalorder %s20, 1
        %s180 = scalar_select %p179, %s20, 1
        %s181 = smul.addr %s180, 2
        %s182 = smul.addr %s181, 8
        %s183 = scalar_lea.vmem %s0, %s182
        %p184 = pneg %p41
        %p185 = pneg %p38
        %s186 = sand.u32 %s54, 1
        %s187 = scalar_lea.sflag [#allocation3], %s186
        %s188 = sand.u32 %s54, 1
        %s189 = smul.addr %s188, 16
        %s190 = scalar_lea.vmem [#allocation2], %s189
        %p191 = pneg %p67
        %p192 = pneg %p64
        %p193 = pneg %p88
        %p194 = pneg %p85
        %p195 = pneg %p114
        %p196 = pneg %p111
        %s197 = sand.u32 %s101, 1
        %s198 = scalar_lea.sflag [#allocation4], %s197
        %s199 = sand.u32 %s101, 1
        %s200 = smul.addr %s199, 16
        %s201 = scalar_lea.vmem [#allocation5], %s200
        %p202 = scmp.lt.s32.totalorder %s20, 1
        %s203 = scalar_select %p202, %s20, 1
        %s204 = smul.addr %s203, 2
        %s205 = smul.addr %s204, 8
        %s206 = scalar_lea.vmem %s0, %s205
        %v207 = vld [vmem:[%s2] sm:$0xff]
        %v208 = vld [vmem:[%s2 + $0x8] sm:$0xff]
        %v209 = vld [vmem:[%s206] sm:$0xff]
        %v210 = vld [vmem:[%s206 + $0x8] sm:$0xff]
        %v211 = vld [vmem:[%s174] sm:$0xff]
        %v212 = vld [vmem:[%s174 + $0x8] sm:$0xff]
        %v213 = vlaneseq
        %v214 = vshrl.u32 %v213, 7
        %v215 = vsub.s32 0, %v214
        %v216 = vrot.slane %v207, %v215
        %v217 = vlaneseq
        %v218 = vshrl.u32 %v217, 7
        %v219 = vsub.s32 0, %v218
        %v220 = vrot.slane %v208, %v219
        %v221 = vmul.f32 %v216, %v209
        %v222 = vmul.f32 %v220, %v210
        %v223 = vmul.f32 %v221, 1.442695
        %v224 = vpow.pop %v223
        %v225 = vmul.f32 %v222, 1.442695
        %v226 = vpow.pop %v225
        %v227 = vmul.f32 %v224, %v224
        %v228 = vmul.f32 %v226, %v226
        %v229 = vlaneseq
        %v230 = vshrl.u32 %v229, 7
        %v231 = vsub.s32 3, %v230
        %v232 = vrot.slane %v207, %v231
        %v233 = vlaneseq
        %v234 = vshrl.u32 %v233, 7
        %v235 = vsub.s32 3, %v234
        %v236 = vrot.slane %v208, %v235
        %v237 = vmul.f32 %v227, %v232
        %v238 = vmul.f32 %v228, %v236
        %v239 = vlaneseq
        %v240 = vshrl.u32 %v239, 7
        %v241 = vsub.s32 2, %v240
        %v242 = vrot.slane %v207, %v241
        %v243 = vlaneseq
        %v244 = vshrl.u32 %v243, 7
        %v245 = vsub.s32 2, %v244
        %v246 = vrot.slane %v208, %v245
        %v247 = vadd.f32 %v242, %v237
        %v248 = vadd.f32 %v246, %v238
        %v249 = vmax.f32 %v247, 0.0
        %v250 = vmax.f32 %v248, 0.0
        %v251 = vlaneseq
        %v252 = vshrl.u32 %v251, 7
        %v253 = vsub.s32 1, %v252
        %v254 = vrot.slane %v207, %v253
        %v255 = vlaneseq
        %v256 = vshrl.u32 %v255, 7
        %v257 = vsub.s32 1, %v256
        %v258 = vrot.slane %v208, %v257
        %v259 = vmul.f32 %v224, %v254
        %v260 = vmul.f32 %v226, %v258
        %v261 = vrsqrt.pop %v249
        %v262 = vmul.f32 %v249, %v261
        %vm263 = vcmp.eq.f32.partialorder %v249, inf
        %v264 = vsel %vm263, %v249, %v262
        %vm265 = vcmp.eq.f32.partialorder %v249, 0.0
        %v266 = vand.u32 %v249, 2147483648
        %v267 = vsel %vm265, %v266, %v264
        %v268 = vrsqrt.pop %v250
        %v269 = vmul.f32 %v250, %v268
        %vm270 = vcmp.eq.f32.partialorder %v250, inf
        %v271 = vsel %vm270, %v250, %v269
        %vm272 = vcmp.eq.f32.partialorder %v250, 0.0
        %v273 = vand.u32 %v250, 2147483648
        %v274 = vsel %vm272, %v273, %v271
        %v275 = vmul.f32 %v267, %v211
        %v276 = vmul.f32 %v274, %v212
        %v277 = vadd.f32 %v259, %v275
        %v278 = vadd.f32 %v260, %v276
        %279 = vst [vmem:[%s201] sm:$0xff] %v277
        %280 = vst [vmem:[%s201 + $0x8] sm:$0xff] %v278
        %s281 = sand.u32 %s101, 1
        %s282 = scalar_lea.sflag [#allocation4], %s281
        %s283 = sand.u32 %s101, 1
        %s284 = smul.addr %s283, 16
        %s285 = scalar_lea.vmem [#allocation5], %s284
        // Predicated region
        $region37: #{tpu_custom_call.1} parent=31 // pred_check
          %p286 = pneg %p111
        $region38: #{tpu_custom_call.1} parent=31 // pred_check_branch
          %288 = sbr.rel (%p286) target = $region40
        $region39: #{tpu_custom_call.1} parent=31 // pred_region
          %s290 = ssub.s32 256, 256
          %291 = vsyncadd %s282, %s290
          %s292 = smul.addr %s20, 2
          %s293 = smul.addr %s292, 128
          %s294 = scalar_lea.hbm %s3, %s293
          %s296 = sshll.u32 %s285, 4
          %s297 = int_to_ptr.vmem [resolvable:$true] %s296
          %299 = dma.vmem_to_hbm [thread:$0]  %s297, 256, %s294, %s282
        $region40: #{tpu_custom_call.1} parent=31 // pred_fallthru
          _
      $region32: #{tpu_custom_call.1} parent=5 // pred_fallthru
        _
      %p300 = scmp.le.s32.totalorder 2, %s15
      // Predicated region
      $region41: #{tpu_custom_call.1} parent=5 // pred_check
        %p301 = pneg %p300
      $region42: #{tpu_custom_call.1} parent=5 // pred_check_branch
        %303 = sbr.rel (%p301) target = $region44
      $region43: #{tpu_custom_call.1} parent=5 // pred_region
        %s304 = ssub.s32 %s15, 2
        // Predicated region
        $region45: #{tpu_custom_call.1} parent=43 // pred_check
          %p305 = pneg %p117
        $region46: #{tpu_custom_call.1} parent=43 // pred_check_branch
          %307 = sbr.rel (%p305) target = $region48
        $region47: #{tpu_custom_call.1} parent=43 // pred_region
          %s308 = sand.u32 %s102, 1
          %s309 = scalar_lea.sflag [#allocation4], %s308
          %s310 = sand.u32 %s102, 1
          %s311 = smul.addr %s310, 16
          %s312 = scalar_lea.vmem [#allocation5], %s311
          %313 = dma.done %s309, 256
        $region48: #{tpu_custom_call.1} parent=43 // pred_fallthru
          _
      $region44: #{tpu_custom_call.1} parent=5 // pred_fallthru
        _
    $region6: #{tpu_custom_call.1} parent=1 // loop_footer
      %s19 = sadd.s32 1, %s15
    $region7: #{tpu_custom_call.1} parent=1 // loop_footer_branch
      %14 = sbr.rel target = $region3
    $region8: #{tpu_custom_call.1} parent=1 // loop_exit
      _
    %314 = vsyncpa [#allocation3], 1
    %s315 = scalar_lea.sflag [#allocation3], 1
    %316 = vsyncpa %s315, 1
    %317 = vsyncpa [#allocation4], 1
    %s318 = scalar_lea.sflag [#allocation4], 1
    %319 = vsyncpa %s318, 1

</llo_original>
